<compile_context>
chip_gen: v5e
topology: v5e:2x2
jax: 0.10.0
libtpu: 0.0.40
codegen_flags: <defaults>
</compile_context>

<pallas_src>
from typing import Dict, List, Optional, Tuple

import jax
import jax.numpy as jnp
from jax.experimental import pallas as pl
from jax.experimental.pallas import tpu as pltpu


# ---------------------------------------------------------------------------
# Hardware detection / budgets
# ---------------------------------------------------------------------------

def _tpu_generation_config() -> Dict[str, int]:
    """Pick (double-buffered block budget, vmem_limit_bytes, #parallel cores).

    v5e/v6e have 128 MiB VMEM (1 TC); v7x has 64 MiB per TC and 2 TCs.
    Unknown hardware falls back to v7x-safe (smallest) numbers.
    """
    vmem_cap = None
    try:
        vmem_cap = int(pltpu.get_tpu_info().vmem_capacity_bytes)
    except Exception:
        vmem_cap = None

    kind = ""
    try:
        kind = jax.devices()[0].device_kind.lower()
    except Exception:
        kind = ""

    is_v7 = ("v7" in kind) or (vmem_cap is not None and vmem_cap <= 80 * (1 << 20))
    if is_v7:
        return dict(block_budget=24 << 20, vmem_limit=48 << 20, parallel_cores=2)

    is_big_vmem = (vmem_cap is not None and vmem_cap >= 120 * (1 << 20)) or any(
        g in kind for g in ("v5", "v6")
    )
    if is_big_vmem:
        return dict(block_budget=56 << 20, vmem_limit=96 << 20, parallel_cores=1)

    # Unknown generation: conservative (fits every known chip).
    return dict(block_budget=24 << 20, vmem_limit=48 << 20, parallel_cores=2)


# ---------------------------------------------------------------------------
# Tile planning
# ---------------------------------------------------------------------------

def _plan_tiles(
    b: int,
    s: int,
    flat_infos: List[Tuple[int, int]],
    block_budget: int,
    want_batch_split: bool,
) -> Tuple[int, int]:
    """Pick (TB, TS) for the fused broadcast.

    Constraints / preferences:
      * TB is a multiple of the packed-dtype minimum sublane count (8 for
        32-bit, 16 for 16-bit, 32 for 8-bit) dividing B, or TB == B.
      * TS == S (full-sequence rows, preferred) or a multiple of 128 (partial
        trailing blocks are masked by Pallas, so TS need not divide S).
      * Search is TS-descending first, TB-descending second: longest
        contiguous rows, then the biggest batch tile that fits the budget.
      * Double-buffered in+out blocks for all fused features fit the budget.
      * If `want_batch_split` (2-TC chips), prefer plans with >= 2 batch
        blocks so both TensorCores get work.
    """
    min_mult = 8
    for _, isz in flat_infos:
        if isz == 2:
            min_mult = max(min_mult, 16)
        elif isz == 1:
            min_mult = max(min_mult, 32)

    tb_all = sorted(
        {t for t in range(min_mult, b + 1, min_mult) if b % t == 0} | {b},
        reverse=True,
    )
    ts_all = sorted(
        {ts for ts in range(128, s + 1, 128)} | {s},
        reverse=True,
    )

    def fits(tb: int, ts: int) -> bool:
        out_b = sum(tb * ts * d * isz for d, isz in flat_infos)
        in_b = sum(tb * d * isz for d, isz in flat_infos)
        return 2 * (out_b + in_b) <= block_budget  # double-buffered

    def search(tb_cands: List[int]) -> Optional[Tuple[int, int]]:
        for ts in ts_all:          # prefer full-sequence / longest rows
            for tb in tb_cands:    # then the largest batch tile that fits
                if fits(tb, ts):
                    return tb, ts
        return None

    if want_batch_split:
        split_cands = [t for t in tb_all if pl.cdiv(b, t) >= 2]
        if split_cands:
            res = search(split_cands)
            if res is not None:
                return res

    res = search(tb_all)
    if res is not None:
        return res

    # TODO(synk): pathological shapes (huge D) can still exceed the budget at
    # the minimum (min_mult, 128) block; would need a feature-splitting path.
    return tb_all[-1], ts_all[-1]


# ---------------------------------------------------------------------------
# Fused Pallas kernel
# ---------------------------------------------------------------------------

def _make_broadcast_kernel(n_feats: int):
    def kernel(*refs):
        in_refs = refs[:n_feats]
        out_refs = refs[n_feats:]
        for x_ref, o_ref in zip(in_refs, out_refs):
            x = x_ref[...]                 # (TB, d)   d = 1 (was 1-D) or D (was 2-D)
            d = x.shape[-1]
            tb = x.shape[0]
            reps = o_ref.shape[-1] // d    # = TS
            if d == 1:
                # (TB, 1) -> (TB, TS): pure lane broadcast.
                o_ref[...] = jnp.broadcast_to(x, o_ref.shape)
            else:
                # (TB, D) -> (TB, TS*D): one broadcast + free reshape instead
                # of a reps-way lane concatenation (jnp.tile).
                o_ref[...] = jnp.broadcast_to(
                    x[:, None, :], (tb, reps, d)
                ).reshape(tb, reps * d)
    return kernel


def broadcast_features_to_seq(
    feats: Dict[str, jax.Array], seq_length: int, *, materialize: bool = True
) -> Dict[str, jax.Array]:
    """Broadcast every feature along a new sequence axis.

        (B,)   -> (B, S)
        (B, D) -> (B, S, D)

    With ``materialize=True`` all features are written out by a single fused
    Pallas call; with ``materialize=False`` lazy ``jnp.broadcast_to`` views
    are returned so XLA can fuse the broadcast into the consumer.
    """
    if not feats:
        return {}

    names = list(feats.keys())
    b: Optional[int] = None
    flat_inputs: List[jax.Array] = []
    flat_ds: List[int] = []
    out_ndims: List[int] = []
    for name in names:
        val = feats[name]
        if val.ndim == 1:
            x2 = val.reshape(val.shape[0], 1)
            d = 1
        elif val.ndim == 2:
            x2 = val
            d = val.shape[1]
        else:
            raise RuntimeError(f"Unsupported number of dimensions: {val.ndim}")
        if b is None:
            b = x2.shape[0]
        elif x2.shape[0] != b:
            raise ValueError(
                f"Feature '{name}' has batch size {x2.shape[0]}, expected {b}."
            )
        flat_inputs.append(x2)
        flat_ds.append(d)
        out_ndims.append(val.ndim)

    s = int(seq_length)

    if not materialize:
        # Fast path: lazy broadcast views — zero HBM traffic if the consumer
        # fuses the broadcast.
        outputs: Dict[str, jax.Array] = {}
        for name, x2, d, nd in zip(names, flat_inputs, flat_ds, out_ndims):
            if nd == 1:
                outputs[name] = jnp.broadcast_to(x2, (b, s))
            else:
                outputs[name] = jnp.broadcast_to(x2[:, None, :], (b, s, d))
        return outputs

    cfg = _tpu_generation_config()
    flat_infos = [(d, x.dtype.itemsize) for d, x in zip(flat_ds, flat_inputs)]
    tb, ts = _plan_tiles(
        b, s, flat_infos, cfg["block_budget"], cfg["parallel_cores"] >= 2
    )
    grid = (pl.cdiv(b, tb), pl.cdiv(s, ts))

    # Input tiles stay VMEM-resident across the sequence axis (index_map does
    # not depend on the sequence grid index -> no re-DMA per S tile).
    in_specs = [pl.BlockSpec((tb, d), lambda bi, si: (bi, 0)) for d in flat_ds]
    # Lane-dense flattened output blocks (TB, TS*D).  TS*D is a multiple of
    # 128 or the full row, so writeback is unmasked.
    out_specs = [
        pl.BlockSpec((tb, ts * d), lambda bi, si: (bi, si)) for d in flat_ds
    ]
    out_shape = [
        jax.ShapeDtypeStruct((b, s * d), x.dtype)
        for d, x in zip(flat_ds, flat_inputs)
    ]

    out_bytes = sum(b * s * d * x.dtype.itemsize for d, x in zip(flat_ds, flat_inputs))
    in_bytes = sum(x.size * x.dtype.itemsize for x in flat_inputs)

    flat_outs = pl.pallas_call(
        _make_broadcast_kernel(len(names)),
        out_shape=out_shape,
        grid=grid,
        in_specs=in_specs,
        out_specs=out_specs,
        compiler_params=pltpu.CompilerParams(
            dimension_semantics=("parallel", "parallel"),
            vmem_limit_bytes=cfg["vmem_limit"],
        ),
        cost_estimate=pl.CostEstimate(
            flops=0, transcendentals=0, bytes_accessed=in_bytes + out_bytes
        ),
    )(*flat_inputs)

    outputs = {}
    for name, flat, d, nd in zip(names, flat_outs, flat_ds, out_ndims):
        if nd == 1:
            outputs[name] = flat                    # already (B, S)
        else:
            # Free reshape: (B, S*D) and (B, S, D) share the same contiguous
            # row-major layout.
            outputs[name] = flat.reshape(b, s, d)
    return outputs


# ---------------------------------------------------------------------------
# Module-equivalent wrapper
# ---------------------------------------------------------------------------

class BroadcastToSequence:
    """JAX/Pallas equivalent of merlin BroadcastToSequence.

    `to_broadcast_features` / `sequence_features` are given directly as lists
    of column names (stands in for the schema selection logic).  Set
    ``materialize=False`` to return lazy broadcast views instead of running
    the Pallas kernel (lets XLA fuse the broadcast into the consumer).
    """

    def __init__(
        self,
        to_broadcast_features: List[str],
        sequence_features: List[str],
        materialize: bool = True,
    ):
        self.to_broadcast_features = to_broadcast_features
        self.sequence_features = sequence_features
        self.materialize = materialize

    def get_seq_length(self, inputs: Dict[str, jax.Array]) -> int:
        if len(self.sequence_features) == 0:
            raise RuntimeError("No sequence features found in the inputs.")
        first_feat = self.sequence_features[0]
        # TODO(synk): ragged "__offsets" path needs a data-dependent .item()
        # read of offsets[-1]; not expressible with static shapes here.
        return inputs[first_feat].shape[1]

    def __call__(self, inputs: Dict[str, jax.Array]) -> Dict[str, jax.Array]:
        seq_length = self.get_seq_length(inputs)
        to_bcast = {
            k: v for k, v in inputs.items() if k in self.to_broadcast_features
        }
        broadcasted = broadcast_features_to_seq(
            to_bcast, seq_length, materialize=self.materialize
        )

        outputs: Dict[str, jax.Array] = {}
        for key, val in inputs.items():
            outputs[key] = broadcasted.get(key, val)
        return outputs


# ---------------------------------------------------------------------------
# Demo / self-check
# ---------------------------------------------------------------------------

if __name__ == "__main__":
    B, S, D = 2, 8, 32
    key = jax.random.PRNGKey(0)
    k1, k2, k3, k4, k5 = jax.random.split(key, 5)

    inputs = {
        # features to broadcast (fused into a single pallas_call)
        "user_id": jax.random.randint(k1, (B,), 0, 100, dtype=jnp.int32),       # 1-D int
        "user_age": jax.random.normal(k2, (B,), dtype=jnp.float32),             # 1-D float
        "user_embedding": jax.random.normal(k3, (B, D), dtype=jnp.float32),     # 2-D
        # sequence features (define seq length; pass through unchanged)
        "item_id_seq": jax.random.randint(k4, (B, S), 0, 1000, dtype=jnp.int32),
        "item_emb_seq": jax.random.normal(k5, (B, S, D), dtype=jnp.float32),
    }

    module = BroadcastToSequence(
        to_broadcast_features=["user_id", "user_age", "user_embedding"],
        sequence_features=["item_id_seq", "item_emb_seq"],
        materialize=True,  # exercise the Pallas kernel path
    )

    outputs = module(inputs)
    jax.block_until_ready(outputs)

    # reference check against plain-JAX broadcast semantics
    ref_uid = jnp.broadcast_to(inputs["user_id"][:, None], (B, S))
    ref_uage = jnp.broadcast_to(inputs["user_age"][:, None], (B, S))
    ref_uemb = jnp.broadcast_to(inputs["user_embedding"][:, None, :], (B, S, D))

    assert outputs["user_id"].shape == (B, S)
    assert outputs["user_id"].dtype == inputs["user_id"].dtype
    assert outputs["user_age"].shape == (B, S)
    assert outputs["user_age"].dtype == inputs["user_age"].dtype
    assert outputs["user_embedding"].shape == (B, S, D)
    assert outputs["user_embedding"].dtype == inputs["user_embedding"].dtype
    assert jnp.array_equal(outputs["user_id"], ref_uid)
    assert jnp.allclose(outputs["user_age"], ref_uage)
    assert jnp.allclose(outputs["user_embedding"], ref_uemb)
    assert jnp.array_equal(outputs["item_id_seq"], inputs["item_id_seq"])
    assert jnp.array_equal(outputs["item_emb_seq"], inputs["item_emb_seq"])

    # also sanity-check the no-materialize fast path
    lazy = BroadcastToSequence(
        to_broadcast_features=["user_id", "user_age", "user_embedding"],
        sequence_features=["item_id_seq", "item_emb_seq"],
        materialize=False,
    )(inputs)
    jax.block_until_ready(lazy)
    assert jnp.array_equal(lazy["user_id"], ref_uid)
    assert jnp.allclose(lazy["user_embedding"], ref_uemb)

    print("KERNEL_OK")
</pallas_src>

<mosaic_0001>
module attributes {stable_mosaic.version = 11 : i64} {
  func.func @kernel(%arg0: i32, %arg1: i32, %arg2: memref<2x1xi32, #tpu.memory_space<vmem>>, %arg3: memref<2x1xf32, #tpu.memory_space<vmem>>, %arg4: memref<2x32xf32, #tpu.memory_space<vmem>>, %arg5: memref<2x8xi32, #tpu.memory_space<vmem>>, %arg6: memref<2x8xf32, #tpu.memory_space<vmem>>, %arg7: memref<2x256xf32, #tpu.memory_space<vmem>>) attributes {dimension_semantics = [#tpu.dimension_semantics<parallel>, #tpu.dimension_semantics<parallel>], iteration_bounds = array<i64: 1, 1>, scalar_prefetch = 0 : i64, scratch_operands = 0 : i64, tpu.core_type = #tpu.core_type<tc>, window_params = [{transform_indices = @transform_0, window_bounds = array<i64: 2, 1>}, {transform_indices = @transform_1, window_bounds = array<i64: 2, 1>}, {transform_indices = @transform_2, window_bounds = array<i64: 2, 32>}, {transform_indices = @transform_3, window_bounds = array<i64: 2, 8>}, {transform_indices = @transform_4, window_bounds = array<i64: 2, 8>}, {transform_indices = @transform_5, window_bounds = array<i64: 2, 256>}]} {
    %c0 = arith.constant 0 : index
    %c0_0 = arith.constant 0 : index
    %0 = vector.load %arg2[%c0, %c0_0] : memref<2x1xi32, #tpu.memory_space<vmem>>, vector<2x1xi32>
    %1 = vector.shape_cast %0 : vector<2x1xi32> to vector<2x1xi32>
    %2 = vector.broadcast %1 : vector<2x1xi32> to vector<2x8xi32>
    %c0_1 = arith.constant 0 : index
    %c0_2 = arith.constant 0 : index
    %3 = vector.load %arg5[%c0_1, %c0_2] : memref<2x8xi32, #tpu.memory_space<vmem>>, vector<2x8xi32>
    tpu.vector_store %arg5[%c0_1, %c0_2], %2 {strides = array<i32>} : memref<2x8xi32, #tpu.memory_space<vmem>>, vector<2x8xi32>,
    %c0_3 = arith.constant 0 : index
    %c0_4 = arith.constant 0 : index
    %4 = vector.load %arg3[%c0_3, %c0_4] : memref<2x1xf32, #tpu.memory_space<vmem>>, vector<2x1xf32>
    %5 = vector.shape_cast %4 : vector<2x1xf32> to vector<2x1xf32>
    %6 = vector.broadcast %5 : vector<2x1xf32> to vector<2x8xf32>
    %c0_5 = arith.constant 0 : index
    %c0_6 = arith.constant 0 : index
    %7 = vector.load %arg6[%c0_5, %c0_6] : memref<2x8xf32, #tpu.memory_space<vmem>>, vector<2x8xf32>
    tpu.vector_store %arg6[%c0_5, %c0_6], %6 {strides = array<i32>} : memref<2x8xf32, #tpu.memory_space<vmem>>, vector<2x8xf32>,
    %c0_7 = arith.constant 0 : index
    %c0_8 = arith.constant 0 : index
    %8 = vector.load %arg4[%c0_7, %c0_8] : memref<2x32xf32, #tpu.memory_space<vmem>>, vector<2x32xf32>
    %9 = vector.shape_cast %8 : vector<2x32xf32> to vector<2x1x32xf32>
    %10 = vector.shape_cast %9 : vector<2x1x32xf32> to vector<2x1x32xf32>
    %11 = vector.broadcast %10 : vector<2x1x32xf32> to vector<2x8x32xf32>
    %12 = vector.shape_cast %11 : vector<2x8x32xf32> to vector<2x256xf32>
    %c0_9 = arith.constant 0 : index
    %c0_10 = arith.constant 0 : index
    %13 = vector.load %arg7[%c0_9, %c0_10] : memref<2x256xf32, #tpu.memory_space<vmem>>, vector<2x256xf32>
    tpu.vector_store %arg7[%c0_9, %c0_10], %12 {strides = array<i32>} : memref<2x256xf32, #tpu.memory_space<vmem>>, vector<2x256xf32>,
    return
  }
  func.func @transform_0(%arg0: i32, %arg1: i32) -> (i32, i32) {
    %c0_i32 = arith.constant 0 : i32
    %c0_i32_0 = arith.constant 0 : i32
    return %arg0, %c0_i32 : i32, i32
  }
  func.func @transform_1(%arg0: i32, %arg1: i32) -> (i32, i32) {
    %c0_i32 = arith.constant 0 : i32
    %c0_i32_0 = arith.constant 0 : i32
    return %arg0, %c0_i32 : i32, i32
  }
  func.func @transform_2(%arg0: i32, %arg1: i32) -> (i32, i32) {
    %c0_i32 = arith.constant 0 : i32
    %c0_i32_0 = arith.constant 0 : i32
    return %arg0, %c0_i32 : i32, i32
  }
  func.func @transform_3(%arg0: i32, %arg1: i32) -> (i32, i32) {
    %c0_i32 = arith.constant 0 : i32
    return %arg0, %arg1 : i32, i32
  }
  func.func @transform_4(%arg0: i32, %arg1: i32) -> (i32, i32) {
    %c0_i32 = arith.constant 0 : i32
    return %arg0, %arg1 : i32, i32
  }
  func.func @transform_5(%arg0: i32, %arg1: i32) -> (i32, i32) {
    %c0_i32 = arith.constant 0 : i32
    return %arg0, %arg1 : i32, i32
  }
}

</mosaic_0001>

<llo_original>
// kernel: tpu_custom_call.1
$region0: #{tpu_custom_call.1}
  #allocation0 [shape = 'u32[]', space=smem, size = 0x4, offset = 0x4, fixed_abs, tag = 'smem constant byte address 0x4 - core index']
  #allocation1 [shape = 'u32[72,128]{1,0:T(1,128)}', space=vmem, size = 0x9000, scoped, tag = 'internal scratch']
  %s0 = inlined_call_operand.vmem [shape: s32[2,1], index: 0, kind: input, shape index: {}]
  %s1 = inlined_call_operand.vmem [shape: f32[2,1], index: 1, kind: input, shape index: {}]
  %s2 = inlined_call_operand.vmem [shape: f32[2,32], index: 2, kind: input, shape index: {}]
  %s3 = inlined_call_operand.hbm [shape: s32[2,8], index: 3, kind: output, shape index: {0}]
  %s4 = inlined_call_operand.hbm [shape: f32[2,8], index: 4, kind: output, shape index: {1}]
  %s5 = inlined_call_operand.hbm [shape: f32[2,256], index: 5, kind: output, shape index: {2}]
  %6 = xla_tuple %s3, %s4, %s5
  %s7 = sld [smem:[#allocation0]]
  $region38: #{tpu_custom_call.1} parent=0
    _
  %s9 = ssub.s32 1, %s7
  %s10 = scalar_select 0, %s9, %s7
  $region1: #{tpu_custom_call.1} parent=0
    #allocation2 [shape = 'u8[1024]{0}', space=vmem, size = 0x400, scoped, tag = 'output window, operand 0, single buffered']
    #allocation3 [shape = 's32[1]{0}', space=sflag, size = 0x4, scoped, tag = 'scoped memory for tpu_custom_call.1']
    #allocation4 [shape = 'u8[1024]{0}', space=vmem, size = 0x400, scoped, tag = 'output window, operand 1, single buffered']
    #allocation5 [shape = 's32[1]{0}', space=sflag, size = 0x4, scoped, tag = 'scoped memory for tpu_custom_call.1']
    #allocation6 [shape = 'u8[2048]{0}', space=vmem, size = 0x800, scoped, tag = 'output window, operand 2, single buffered']
    %11 = vsyncpa [#allocation3], 0
    %12 = vsyncpa [#allocation5], 0
    // Predicated region
    $region2: #{tpu_custom_call.1} parent=1 // pred_check
      _
    $region3: #{tpu_custom_call.1} parent=1 // pred_check_branch
      %14 = sbr.rel (0) target = $region5
    $region4: #{tpu_custom_call.1} parent=1 // pred_region
      _
    $region5: #{tpu_custom_call.1} parent=1 // pred_fallthru
      _
    // Predicated region
    $region6: #{tpu_custom_call.1} parent=1 // pred_check
      _
    $region7: #{tpu_custom_call.1} parent=1 // pred_check_branch
      %16 = sbr.rel (0) target = $region9
    $region8: #{tpu_custom_call.1} parent=1 // pred_region
      _
    $region9: #{tpu_custom_call.1} parent=1 // pred_fallthru
      _
    // Predicated region
    $region10: #{tpu_custom_call.1} parent=1 // pred_check
      _
    $region11: #{tpu_custom_call.1} parent=1 // pred_check_branch
      %18 = sbr.rel (0) target = $region13
    $region12: #{tpu_custom_call.1} parent=1 // pred_region
      _
    $region13: #{tpu_custom_call.1} parent=1 // pred_fallthru
      _
    %v19 = vld [vmem:[%s0] sm:$0x3]
    %20 = vset.pattern.permute.xlu0 0
    %21 = vperm.xlu0 %20, %v19
    %v22 = vpop.permute.xlu0 %21
    %vm23 = vcmask 58368
    %24 = vst.msk [vmem:[#allocation2] sm:$0x3] %vm23, %v22
    %v25 = vld [vmem:[%s1] sm:$0x3]
    %27 = vset.pattern.permute.xlu0 0
    %28 = vperm.xlu0 %27, %v25
    %v29 = vpop.permute.xlu0 %28
    %31 = vst.msk [vmem:[#allocation4] sm:$0x3] %vm23, %v29
    %v32 = vld [vmem:[%s2] sm:$0x3]
    %v34 = vrot.slane %v32, 1
    %v35 = vperm.slane %v32, 0
    %v36 = vperm.slane %v34, 0
    %v39 = vrot.slane %v35, 4
    %vm40 = vcmask 1047556
    %v41 = vsel %vm40, 0.0, %v39
    %v43 = vunpack.c.l.s4 1983009808
    %v44 = vunpack.c.0.s8 %v43
    %v45 = vperm.slane %v35, %v44
    %v47 = vunpack.c.l.s4 1983009808
    %v48 = vunpack.c.0.s8 %v47
    %v49 = vperm.slane %v41, %v48
    %v50 = vrot.slane %v36, 4
    %v51 = vsel %vm40, 0.0, %v50
    %v53 = vunpack.c.l.s4 1983009808
    %v54 = vunpack.c.0.s8 %v53
    %v55 = vperm.slane %v36, %v54
    %v57 = vunpack.c.l.s4 1983009808
    %v58 = vunpack.c.0.s8 %v57
    %v59 = vperm.slane %v51, %v58
    %v60 = vrot.slane %v55, 4
    %v61 = vsel %vm40, %v60, %v45
    %v62 = vrot.slane %v45, 4
    %v63 = vsel %vm40, %v55, %v62
    %v65 = vunpack.c.l.s4 1934713408
    %v66 = vunpack.c.0.s8 %v65
    %v67 = vperm.slane %v61, %v66
    %v69 = vunpack.c.l.s4 1934713408
    %v70 = vunpack.c.0.s8 %v69
    %v71 = vperm.slane %v63, %v70
    %v72 = vrot.slane %v59, 4
    %v73 = vsel %vm40, %v72, %v49
    %v74 = vrot.slane %v49, 4
    %v75 = vsel %vm40, %v59, %v74
    %v77 = vunpack.c.l.s4 1934713408
    %v78 = vunpack.c.0.s8 %v77
    %v79 = vperm.slane %v73, %v78
    %v81 = vunpack.c.l.s4 1934713408
    %v82 = vunpack.c.0.s8 %v81
    %v83 = vperm.slane %v75, %v82
    %v84 = vrot.slane %v67, 4
    %v85 = vsel %vm40, 0.0, %v84
    %v86 = vrot.slane %v71, 4
    %v87 = vsel %vm40, 0.0, %v86
    %v88 = vrot.slane %v79, 4
    %v89 = vsel %vm40, 0.0, %v88
    %v90 = vrot.slane %v83, 4
    %v91 = vsel %vm40, 0.0, %v90
    %93 = vrot.lane.b32.xlu0 %v85, 32
    %v94 = vpop.permute.xlu0 %93
    %97 = vrot.lane.b32.xlu0 %v71, 64
    %v98 = vpop.permute.xlu0 %97
    %101 = vrot.lane.b32.xlu0 %v87, 96
    %v102 = vpop.permute.xlu0 %101
    %105 = vrot.lane.b32.xlu0 %v89, 32
    %v106 = vpop.permute.xlu0 %105
    %109 = vrot.lane.b32.xlu0 %v83, 64
    %v110 = vpop.permute.xlu0 %109
    %113 = vrot.lane.b32.xlu0 %v91, 96
    %v114 = vpop.permute.xlu0 %113
    %vm116 = vcmask 261120
    %v117 = vsel %vm116, %v67, %v94
    %vm118 = vcmask 523264
    %v119 = vsel %vm118, %v117, %v98
    %vm120 = vcmask 785408
    %v121 = vsel %vm120, %v119, %v102
    %v122 = vsel %vm116, %v79, %v106
    %v123 = vsel %vm118, %v122, %v110
    %v124 = vsel %vm120, %v123, %v114
    %v127 = vrot.slane %v124, 6
    %vm128 = vcmask 1041408
    %v129 = vsel %vm128, %v121, %v127
    %131 = vst [vmem:[#allocation6] sm:$0xf] %v129
    // Predicated region
    $region14: #{tpu_custom_call.1} parent=1 // pred_check
      _
    $region15: #{tpu_custom_call.1} parent=1 // pred_check_branch
      %133 = sbr.rel (0) target = $region17
    $region16: #{tpu_custom_call.1} parent=1 // pred_region
      %135 = vsyncadd [#allocation3], 0
      %s137 = sshll.u32 [#allocation2], 4
      %s138 = int_to_ptr.vmem [resolvable:$true] %s137
      %s139 = sshll.u32 %s3, 4
      %s140 = int_to_ptr.hbm [resolvable:$true] %s139
      %142 = dma.vmem_to_hbm [thread:$0]  %s138, 32, %s140, [#allocation3]
    $region17: #{tpu_custom_call.1} parent=1 // pred_fallthru
      _
    // Predicated region
    $region18: #{tpu_custom_call.1} parent=1 // pred_check
      _
    $region19: #{tpu_custom_call.1} parent=1 // pred_check_branch
      %144 = sbr.rel (0) target = $region21
    $region20: #{tpu_custom_call.1} parent=1 // pred_region
      %146 = vsyncadd [#allocation5], 0
      %s148 = sshll.u32 [#allocation4], 4
      %s149 = int_to_ptr.vmem [resolvable:$true] %s148
      %s150 = sshll.u32 %s4, 4
      %s151 = int_to_ptr.hbm [resolvable:$true] %s150
      %153 = dma.vmem_to_hbm [thread:$0]  %s149, 32, %s151, [#allocation5]
    $region21: #{tpu_custom_call.1} parent=1 // pred_fallthru
      _
    // Predicated region
    $region22: #{tpu_custom_call.1} parent=1 // pred_check
      _
    $region23: #{tpu_custom_call.1} parent=1 // pred_check_branch
      %155 = sbr.rel (0) target = $region25
    $region24: #{tpu_custom_call.1} parent=1 // pred_region
      %157 = vsyncadd [#allocation5], 0
      %s159 = sshll.u32 [#allocation6], 4
      %s160 = int_to_ptr.vmem [resolvable:$true] %s159
      %s161 = sshll.u32 %s5, 4
      %s162 = int_to_ptr.hbm [resolvable:$true] %s161
      %164 = dma.vmem_to_hbm [thread:$0]  %s160, 64, %s162, [#allocation5]
    $region25: #{tpu_custom_call.1} parent=1 // pred_fallthru
      _
    // Predicated region
    $region26: #{tpu_custom_call.1} parent=1 // pred_check
      _
    $region27: #{tpu_custom_call.1} parent=1 // pred_check_branch
      %166 = sbr.rel (0) target = $region29
    $region28: #{tpu_custom_call.1} parent=1 // pred_region
      %168 = dma.done [#allocation3], 32
    $region29: #{tpu_custom_call.1} parent=1 // pred_fallthru
      _
    // Predicated region
    $region30: #{tpu_custom_call.1} parent=1 // pred_check
      _
    $region31: #{tpu_custom_call.1} parent=1 // pred_check_branch
      %170 = sbr.rel (0) target = $region33
    $region32: #{tpu_custom_call.1} parent=1 // pred_region
      %172 = dma.done [#allocation5], 32
    $region33: #{tpu_custom_call.1} parent=1 // pred_fallthru
      _
    // Predicated region
    $region34: #{tpu_custom_call.1} parent=1 // pred_check
      _
    $region35: #{tpu_custom_call.1} parent=1 // pred_check_branch
      %174 = sbr.rel (0) target = $region37
    $region36: #{tpu_custom_call.1} parent=1 // pred_region
      %176 = dma.done [#allocation5], 64
    $region37: #{tpu_custom_call.1} parent=1 // pred_fallthru
      _
    %177 = vsyncpa [#allocation3], 1
    %178 = vsyncpa [#allocation5], 1

</llo_original>
